<compile_context>
chip_gen: v7x
topology: tpu7x:2x2x1
jax: 0.10.0
libtpu: 0.0.40
codegen_flags: <defaults>
</compile_context>

<pallas_src>
import functools

import jax
import jax.numpy as jnp
from jax.experimental import pallas as pl
from jax.experimental.pallas import tpu as pltpu

F32 = jnp.float32


# ------------------------------- kernels -----------------------------------

def _gate_kernel_dense(w_ref, b_ref, x1_ref, x2_ref, o_ref, *, channels):
    """Small-C path: voxels dense on (sublane, lane) = (rows, 128).

    w_ref : SMEM (C,)  conv weight scalars
    b_ref : SMEM (1,)  conv bias
    x1_ref, x2_ref, o_ref : (1, C, TR, 128) VMEM blocks
    """
    # channel contraction = unrolled chain of scalar x tile FMAs (VPU only)
    logits = x2_ref[0, 0].astype(F32) * w_ref[0]
    for c in range(1, channels):
        logits = logits + x2_ref[0, c].astype(F32) * w_ref[c]
    attn = jax.nn.sigmoid(logits + b_ref[0])                       # (TR, 128), EUP
    for c in range(channels):
        o_ref[0, c] = (x1_ref[0, c].astype(F32) * attn).astype(o_ref.dtype)


def _gate_kernel_flat(x1_ref, x2_ref, w_ref, b_ref, o_ref, *, use_mxu):
    """Generic path: channels on sublanes, voxels on lanes.

    x1_ref, x2_ref, o_ref : (1, C, TN) VMEM blocks
    w_ref : (1, C) VMEM row (MXU path) or (C, 1) VMEM column (VPU fallback)
    b_ref : SMEM (1,)
    """
    x2 = x2_ref[0].astype(F32)                                     # (C, TN)
    if use_mxu:
        logits = jnp.dot(w_ref[...], x2, preferred_element_type=F32)   # (1, TN)
    else:
        logits = jnp.sum(x2 * w_ref[...], axis=0, keepdims=True)       # (1, TN)
    attn = jax.nn.sigmoid(logits + b_ref[0])
    o_ref[0] = (x1_ref[0].astype(F32) * attn).astype(o_ref.dtype)


# ------------------------------- wrapper ------------------------------------

def cross_attention_transformer(x1, x2, w, b, *, target_block_bytes=2 << 20):
    """out = x1 * sigmoid(conv1x1x1(x2; w, b)) for NCDHW inputs.

    x1, x2 : (B, C, D, H, W)  any float dtype (kept native for the DMA)
    w      : (C,) (or any shape with C elements) -- Conv3d(C, 1, k=1) weight
    b      : (1,)                                 -- Conv3d bias
    """
    B, C, D, H, W = x1.shape
    assert x2.shape == x1.shape, (x1.shape, x2.shape)
    N = D * H * W
    out_dtype = x1.dtype
    dt_bytes = jnp.dtype(out_dtype).itemsize

    w = w.reshape(C).astype(F32)
    b = b.reshape(1).astype(F32)

    # generation-aware budget: 3 arrays x 2 pipeline buffers per block must stay
    # well under v7x's 64 MiB VMEM (v5e/v6e have 128 MiB).
    target_block_bytes = min(int(target_block_bytes), (40 << 20) // 6)

    if C <= 8 and N % 128 == 0:
        # ---- small-C path: voxels fill full (rows, 128) vregs --------------
        R = N // 128
        x1r = x1.reshape(B, C, R, 128)          # pure reshapes, no HBM copies
        x2r = x2.reshape(B, C, R, 128)

        target_rows = max(1, target_block_bytes // (C * 128 * dt_bytes))
        if target_rows >= R or R <= 8:
            tr = R
        else:
            tr = max(8, (min(target_rows, R) // 8) * 8)
        num_tiles = pl.cdiv(R, tr)
        if B == 1 and num_tiles == 1 and R >= 16:
            tr = max(8, (pl.cdiv(R, 2) // 8) * 8)     # give v7x's 2nd TC work
            num_tiles = pl.cdiv(R, tr)

        resident = 3 * 2 * C * tr * 128 * dt_bytes
        vmem_limit = int(min(48 << 20, max(32 << 20, resident + (4 << 20))))

        blk = pl.BlockSpec((1, C, tr, 128), lambda bi, ti: (bi, 0, ti, 0))
        out = pl.pallas_call(
            functools.partial(_gate_kernel_dense, channels=C),
            out_shape=jax.ShapeDtypeStruct((B, C, R, 128), out_dtype),
            grid=(B, num_tiles),
            in_specs=[
                pl.BlockSpec(memory_space=pltpu.MemorySpace.SMEM),   # w (C,)
                pl.BlockSpec(memory_space=pltpu.MemorySpace.SMEM),   # b (1,)
                blk,                                                 # x1
                blk,                                                 # x2
            ],
            out_specs=blk,
            compiler_params=pltpu.CompilerParams(
                dimension_semantics=("parallel", "parallel"),
                vmem_limit_bytes=vmem_limit),
        )(w, b, x1r, x2r)
        return out.reshape(B, C, D, H, W)

    # ---- generic path: channels on sublanes, voxels on lanes ---------------
    x1f = x1.reshape(B, C, N)
    x2f = x2.reshape(B, C, N)

    if N < 128:
        tn = N                                   # full-extent lane block
    else:
        target_lanes = max(128, target_block_bytes // (C * dt_bytes))
        tn = min((target_lanes // 128) * 128, pl.cdiv(N, 128) * 128)
    num_tiles = pl.cdiv(N, tn)
    if B == 1 and num_tiles == 1 and N >= 256:
        tn = max(128, (pl.cdiv(N, 2) // 128) * 128)   # give v7x's 2nd TC work
        num_tiles = pl.cdiv(N, tn)

    use_mxu = C >= 32            # deep channel reductions go to the MXU
    if use_mxu:
        w2d = w.reshape(1, C)
        w_spec = pl.BlockSpec((1, C), lambda bi, ti: (0, 0))
    else:
        w2d = w.reshape(C, 1)
        w_spec = pl.BlockSpec((C, 1), lambda bi, ti: (0, 0))

    resident = 3 * 2 * C * tn * dt_bytes
    vmem_limit = int(min(48 << 20, max(32 << 20, resident + (4 << 20))))

    blk = pl.BlockSpec((1, C, tn), lambda bi, ti: (bi, 0, ti))
    out = pl.pallas_call(
        functools.partial(_gate_kernel_flat, use_mxu=use_mxu),
        out_shape=jax.ShapeDtypeStruct((B, C, N), out_dtype),
        grid=(B, num_tiles),
        in_specs=[
            blk,                                                   # x1
            blk,                                                   # x2
            w_spec,                                                # conv weight
            pl.BlockSpec(memory_space=pltpu.MemorySpace.SMEM),     # conv bias
        ],
        out_specs=blk,
        compiler_params=pltpu.CompilerParams(
            dimension_semantics=("parallel", "parallel"),
            vmem_limit_bytes=vmem_limit),
    )(x1f, x2f, w2d, b)
    return out.reshape(B, C, D, H, W)


# --------------------------------- main -------------------------------------

if __name__ == "__main__":
    def run_case(key, shape, atol):
        B, C, D, H, W = shape
        k1, k2, kw, kb = jax.random.split(key, 4)
        x1 = jax.random.normal(k1, (B, C, D, H, W), F32)
        x2 = jax.random.normal(k2, (B, C, D, H, W), F32)
        w = jax.random.normal(kw, (C,), F32) * 0.1     # Conv3d(C, 1, k=1) weight
        b = jax.random.normal(kb, (1,), F32) * 0.1     # Conv3d bias

        out = jax.block_until_ready(
            jax.jit(cross_attention_transformer)(x1, x2, w, b))

        # exact f32 reference (elementwise multiply + reduce, no MXU rounding)
        logits = jnp.sum(x2 * w[None, :, None, None, None], axis=1,
                         keepdims=True) + b[0]
        ref = x1 * jax.nn.sigmoid(logits)

        assert out.shape == x1.shape, (out.shape, x1.shape)
        assert out.dtype == x1.dtype, out.dtype
        assert bool(jnp.all(jnp.isfinite(out)))
        assert bool(jnp.allclose(out, ref, atol=atol, rtol=atol)), float(
            jnp.max(jnp.abs(out - ref)))

    keys = jax.random.split(jax.random.PRNGKey(0), 3)
    run_case(keys[0], (2, 4, 8, 8, 8), 1e-5)    # small-C dense path (module demo)
    run_case(keys[1], (2, 3, 5, 5, 5), 1e-5)    # generic path, ragged N, VPU reduce
    run_case(keys[2], (2, 64, 8, 8, 8), 1e-2)   # generic path, MXU channel reduce
    print("KERNEL_OK")
</pallas_src>

<mosaic_0001>
module attributes {stable_mosaic.version = 11 : i64} {
  func.func @_gate_kernel_dense(%arg0: i32, %arg1: i32, %arg2: memref<4xf32, #tpu.memory_space<smem>>, %arg3: memref<1xf32, #tpu.memory_space<smem>>, %arg4: memref<1x4x4x128xf32, #tpu.memory_space<vmem>>, %arg5: memref<1x4x4x128xf32, #tpu.memory_space<vmem>>, %arg6: memref<1x4x4x128xf32, #tpu.memory_space<vmem>>) attributes {dimension_semantics = [#tpu.dimension_semantics<parallel>, #tpu.dimension_semantics<parallel>], iteration_bounds = array<i64: 2, 1>, scalar_prefetch = 0 : i64, scratch_operands = 0 : i64, tpu.core_type = #tpu.core_type<tc>, window_params = [{transform_indices = @transform_0, window_bounds = array<i64: 4>}, {transform_indices = @transform_1, window_bounds = array<i64: 1>}, {transform_indices = @transform_2, window_bounds = array<i64: 1, 4, 4, 128>}, {transform_indices = @transform_3, window_bounds = array<i64: 1, 4, 4, 128>}, {transform_indices = @transform_4, window_bounds = array<i64: 1, 4, 4, 128>}]} {
    %c0 = arith.constant 0 : index
    %c0_0 = arith.constant 0 : index
    %c0_1 = arith.constant 0 : index
    %c0_2 = arith.constant 0 : index
    %0 = vector.load %arg5[%c0, %c0_0, %c0_1, %c0_2] : memref<1x4x4x128xf32, #tpu.memory_space<vmem>>, vector<1x1x4x128xf32>
    %1 = vector.shape_cast %0 : vector<1x1x4x128xf32> to vector<4x128xf32>
    %c0_3 = arith.constant 0 : index
    %2 = memref.load %arg2[%c0_3] : memref<4xf32, #tpu.memory_space<smem>>
    %3 = vector.broadcast %2 : f32 to vector<4x128xf32>
    %4 = arith.mulf %1, %3 : vector<4x128xf32>
    %c0_4 = arith.constant 0 : index
    %c1 = arith.constant 1 : index
    %c0_5 = arith.constant 0 : index
    %c0_6 = arith.constant 0 : index
    %5 = vector.load %arg5[%c0_4, %c1, %c0_5, %c0_6] : memref<1x4x4x128xf32, #tpu.memory_space<vmem>>, vector<1x1x4x128xf32>
    %6 = vector.shape_cast %5 : vector<1x1x4x128xf32> to vector<4x128xf32>
    %c1_7 = arith.constant 1 : index
    %7 = memref.load %arg2[%c1_7] : memref<4xf32, #tpu.memory_space<smem>>
    %8 = vector.broadcast %7 : f32 to vector<4x128xf32>
    %9 = arith.mulf %6, %8 : vector<4x128xf32>
    %10 = arith.addf %4, %9 : vector<4x128xf32>
    %c0_8 = arith.constant 0 : index
    %c2 = arith.constant 2 : index
    %c0_9 = arith.constant 0 : index
    %c0_10 = arith.constant 0 : index
    %11 = vector.load %arg5[%c0_8, %c2, %c0_9, %c0_10] : memref<1x4x4x128xf32, #tpu.memory_space<vmem>>, vector<1x1x4x128xf32>
    %12 = vector.shape_cast %11 : vector<1x1x4x128xf32> to vector<4x128xf32>
    %c2_11 = arith.constant 2 : index
    %13 = memref.load %arg2[%c2_11] : memref<4xf32, #tpu.memory_space<smem>>
    %14 = vector.broadcast %13 : f32 to vector<4x128xf32>
    %15 = arith.mulf %12, %14 : vector<4x128xf32>
    %16 = arith.addf %10, %15 : vector<4x128xf32>
    %c0_12 = arith.constant 0 : index
    %c3 = arith.constant 3 : index
    %c0_13 = arith.constant 0 : index
    %c0_14 = arith.constant 0 : index
    %17 = vector.load %arg5[%c0_12, %c3, %c0_13, %c0_14] : memref<1x4x4x128xf32, #tpu.memory_space<vmem>>, vector<1x1x4x128xf32>
    %18 = vector.shape_cast %17 : vector<1x1x4x128xf32> to vector<4x128xf32>
    %c3_15 = arith.constant 3 : index
    %19 = memref.load %arg2[%c3_15] : memref<4xf32, #tpu.memory_space<smem>>
    %20 = vector.broadcast %19 : f32 to vector<4x128xf32>
    %21 = arith.mulf %18, %20 : vector<4x128xf32>
    %22 = arith.addf %16, %21 : vector<4x128xf32>
    %c0_16 = arith.constant 0 : index
    %23 = memref.load %arg3[%c0_16] : memref<1xf32, #tpu.memory_space<smem>>
    %24 = vector.broadcast %23 : f32 to vector<4x128xf32>
    %25 = arith.addf %22, %24 : vector<4x128xf32>
    %26 = arith.negf %25 : vector<4x128xf32>
    %27 = math.exp %26 : vector<4x128xf32>
    %cst = arith.constant 1.000000e+00 : f32
    %28 = vector.broadcast %cst : f32 to vector<4x128xf32>
    %29 = arith.addf %28, %27 : vector<4x128xf32>
    %30 = arith.divf %28, %29 : vector<4x128xf32>
    %c0_17 = arith.constant 0 : index
    %c0_18 = arith.constant 0 : index
    %c0_19 = arith.constant 0 : index
    %c0_20 = arith.constant 0 : index
    %31 = vector.load %arg4[%c0_17, %c0_18, %c0_19, %c0_20] : memref<1x4x4x128xf32, #tpu.memory_space<vmem>>, vector<1x1x4x128xf32>
    %32 = vector.shape_cast %31 : vector<1x1x4x128xf32> to vector<4x128xf32>
    %33 = arith.mulf %32, %30 : vector<4x128xf32>
    %c0_21 = arith.constant 0 : index
    %c0_22 = arith.constant 0 : index
    %c0_23 = arith.constant 0 : index
    %c0_24 = arith.constant 0 : index
    %34 = vector.load %arg6[%c0_21, %c0_22, %c0_23, %c0_24] : memref<1x4x4x128xf32, #tpu.memory_space<vmem>>, vector<1x1x4x128xf32>
    %35 = vector.shape_cast %34 : vector<1x1x4x128xf32> to vector<4x128xf32>
    %36 = vector.shape_cast %33 : vector<4x128xf32> to vector<1x1x4x128xf32>
    tpu.vector_store %arg6[%c0_21, %c0_22, %c0_23, %c0_24], %36 {strides = array<i32>} : memref<1x4x4x128xf32, #tpu.memory_space<vmem>>, vector<1x1x4x128xf32>,
    %c0_25 = arith.constant 0 : index
    %c1_26 = arith.constant 1 : index
    %c0_27 = arith.constant 0 : index
    %c0_28 = arith.constant 0 : index
    %37 = vector.load %arg4[%c0_25, %c1_26, %c0_27, %c0_28] : memref<1x4x4x128xf32, #tpu.memory_space<vmem>>, vector<1x1x4x128xf32>
    %38 = vector.shape_cast %37 : vector<1x1x4x128xf32> to vector<4x128xf32>
    %39 = arith.mulf %38, %30 : vector<4x128xf32>
    %c0_29 = arith.constant 0 : index
    %c1_30 = arith.constant 1 : index
    %c0_31 = arith.constant 0 : index
    %c0_32 = arith.constant 0 : index
    %40 = vector.load %arg6[%c0_29, %c1_30, %c0_31, %c0_32] : memref<1x4x4x128xf32, #tpu.memory_space<vmem>>, vector<1x1x4x128xf32>
    %41 = vector.shape_cast %40 : vector<1x1x4x128xf32> to vector<4x128xf32>
    %42 = vector.shape_cast %39 : vector<4x128xf32> to vector<1x1x4x128xf32>
    tpu.vector_store %arg6[%c0_29, %c1_30, %c0_31, %c0_32], %42 {strides = array<i32>} : memref<1x4x4x128xf32, #tpu.memory_space<vmem>>, vector<1x1x4x128xf32>,
    %c0_33 = arith.constant 0 : index
    %c2_34 = arith.constant 2 : index
    %c0_35 = arith.constant 0 : index
    %c0_36 = arith.constant 0 : index
    %43 = vector.load %arg4[%c0_33, %c2_34, %c0_35, %c0_36] : memref<1x4x4x128xf32, #tpu.memory_space<vmem>>, vector<1x1x4x128xf32>
    %44 = vector.shape_cast %43 : vector<1x1x4x128xf32> to vector<4x128xf32>
    %45 = arith.mulf %44, %30 : vector<4x128xf32>
    %c0_37 = arith.constant 0 : index
    %c2_38 = arith.constant 2 : index
    %c0_39 = arith.constant 0 : index
    %c0_40 = arith.constant 0 : index
    %46 = vector.load %arg6[%c0_37, %c2_38, %c0_39, %c0_40] : memref<1x4x4x128xf32, #tpu.memory_space<vmem>>, vector<1x1x4x128xf32>
    %47 = vector.shape_cast %46 : vector<1x1x4x128xf32> to vector<4x128xf32>
    %48 = vector.shape_cast %45 : vector<4x128xf32> to vector<1x1x4x128xf32>
    tpu.vector_store %arg6[%c0_37, %c2_38, %c0_39, %c0_40], %48 {strides = array<i32>} : memref<1x4x4x128xf32, #tpu.memory_space<vmem>>, vector<1x1x4x128xf32>,
    %c0_41 = arith.constant 0 : index
    %c3_42 = arith.constant 3 : index
    %c0_43 = arith.constant 0 : index
    %c0_44 = arith.constant 0 : index
    %49 = vector.load %arg4[%c0_41, %c3_42, %c0_43, %c0_44] : memref<1x4x4x128xf32, #tpu.memory_space<vmem>>, vector<1x1x4x128xf32>
    %50 = vector.shape_cast %49 : vector<1x1x4x128xf32> to vector<4x128xf32>
    %51 = arith.mulf %50, %30 : vector<4x128xf32>
    %c0_45 = arith.constant 0 : index
    %c3_46 = arith.constant 3 : index
    %c0_47 = arith.constant 0 : index
    %c0_48 = arith.constant 0 : index
    %52 = vector.load %arg6[%c0_45, %c3_46, %c0_47, %c0_48] : memref<1x4x4x128xf32, #tpu.memory_space<vmem>>, vector<1x1x4x128xf32>
    %53 = vector.shape_cast %52 : vector<1x1x4x128xf32> to vector<4x128xf32>
    %54 = vector.shape_cast %51 : vector<4x128xf32> to vector<1x1x4x128xf32>
    tpu.vector_store %arg6[%c0_45, %c3_46, %c0_47, %c0_48], %54 {strides = array<i32>} : memref<1x4x4x128xf32, #tpu.memory_space<vmem>>, vector<1x1x4x128xf32>,
    return
  }
  func.func @transform_0(%arg0: i32, %arg1: i32) -> i32 {
    %c0_i32 = arith.constant 0 : i32
    %c0_i32_0 = arith.constant 0 : i32
    return %c0_i32 : i32
  }
  func.func @transform_1(%arg0: i32, %arg1: i32) -> i32 {
    %c0_i32 = arith.constant 0 : i32
    %c0_i32_0 = arith.constant 0 : i32
    return %c0_i32 : i32
  }
  func.func @transform_2(%arg0: i32, %arg1: i32) -> (i32, i32, i32, i32) {
    %c0_i32 = arith.constant 0 : i32
    %c0_i32_0 = arith.constant 0 : i32
    %c0_i32_1 = arith.constant 0 : i32
    return %arg0, %c0_i32, %arg1, %c0_i32_0 : i32, i32, i32, i32
  }
  func.func @transform_3(%arg0: i32, %arg1: i32) -> (i32, i32, i32, i32) {
    %c0_i32 = arith.constant 0 : i32
    %c0_i32_0 = arith.constant 0 : i32
    %c0_i32_1 = arith.constant 0 : i32
    return %arg0, %c0_i32, %arg1, %c0_i32_0 : i32, i32, i32, i32
  }
  func.func @transform_4(%arg0: i32, %arg1: i32) -> (i32, i32, i32, i32) {
    %c0_i32 = arith.constant 0 : i32
    %c0_i32_0 = arith.constant 0 : i32
    %c0_i32_1 = arith.constant 0 : i32
    return %arg0, %c0_i32, %arg1, %c0_i32_0 : i32, i32, i32, i32
  }
}

</mosaic_0001>

<llo_original>
// kernel: cross_attention_transformer.1
$region0: #{cross_attention_transformer.1}
  #allocation0 [shape = 'u32[]', space=smem, size = 0x4, offset = 0x4, fixed_abs, tag = 'smem constant byte address 0x4 - core index']
  #allocation1 [shape = 'u32[144,128]{1,0:T(1,128)}', space=vmem, size = 0x12000, scoped, tag = 'internal scratch']
  #allocation2 [shape = 'f32[1]{0:T(128)S(6)}', space=smem, size = 0x200, scoped, tag = 'scoped memory for cross_attention_transformer.1']
  %s0 = inlined_call_operand.vmem [shape: f32[4], index: 0, kind: input, shape index: {}]
  %s1 = inlined_call_operand.<no memory space> [shape: f32[1], index: 1, kind: input, shape index: {}]
  %s2 = inlined_call_operand.vmem [shape: f32[2,4,4,128], index: 2, kind: input, shape index: {}]
  %s3 = inlined_call_operand.vmem [shape: f32[2,4,4,128], index: 3, kind: input, shape index: {}]
  %s4 = inlined_call_operand.vmem [shape: f32[2,4,4,128], index: 4, kind: output, shape index: {}]
  %s5 = sld [smem:[#allocation0]]
  $region53: #{cross_attention_transformer.1} parent=0
    _
  %s7 = ssub.s32 1, %s5
  %s8 = scalar_select 0, %s7, %s5
  %9 = sst [smem:[#allocation2]] %s1
  $region1: #{cross_attention_transformer.1} parent=0
    #allocation3 [shape = 'u8[512]{0}', space=smem, size = 0x200, scoped, tag = 'input window, operand 0, single buffered']
    #allocation4 [shape = 's32[2]{0}', space=sflag, size = 0x8, scoped, tag = 'scoped memory for cross_attention_transformer.1']
    %10 = vsyncpa [#allocation4], 0
    loop: start=0, step=1, limit=4
    $region2: #{cross_attention_transformer.1} parent=1 // loop_pre_header
      _
    $region3: #{cross_attention_transformer.1} parent=1 // loop_header
      %s12 = sphi 0, %s16
      %p13 = scmp.ge.s32.totalorder %s12, 4
      %s19 = sphi 0, %s31
      %s20 = sphi 0, %s27
      %s21 = sphi 0, %s19
      %s22 = sphi 0, %s20
      %s23 = sphi 0, %s21
      %s24 = sphi 0, %s22
      %s32 = sphi 0, %s32
      %s34 = sphi 0, %s32
      %s35 = sphi 0, %s34
      %s49 = sphi 0, %s35
      %s53 = sphi 0, %s53
      %s55 = sphi 0, %s53
      %s56 = sphi 0, %s55
      %s70 = sphi 0, %s56
      %s78 = sphi 0, %s80
      %s81 = sphi 0, %s78
      %s82 = sphi 0, %s81
      %s98 = sphi 0, %s82
      %s106 = sphi 0, %s108
      %s109 = sphi 0, %s106
      %s110 = sphi 0, %s109
      %s126 = sphi 0, %s110
      %s134 = sphi 0, %s136
      %s137 = sphi 0, %s134
      %s138 = sphi 0, %s137
      %s154 = sphi 0, %s138
    $region4: #{cross_attention_transformer.1} parent=1 // loop_header_branch
      %15 = sbr.rel (%p13) target = $region8
    $region5: #{cross_attention_transformer.1} parent=1 // loop_body
      %s17 = ssub.s32 %s12, 1
      %s18 = ssub.s32 %s12, 2
      %s25 = sadd.s32 1, %s20
      %p26 = scmp.ge.s32.totalorder %s25, 1
      %s27 = scalar_select %p26, 0, %s25
      %s28 = sadd.s32 1, %s19
      %s29 = scalar_select %p26, %s28, %s19
      %p30 = scmp.ge.s32.totalorder %s29, 2
      %s31 = scalar_select %p30, 0, %s29
      %s33 = sadd.s32 %s32, 1
      %p36 = scmp.eq.s32.totalorder %s12, 1
      %p37 = scmp.ne.s32.totalorder %s32, %s34
      %p38 = scmp.eq.s32.totalorder %s12, 0
      %p39 = por %p37, %p38
      %p40 = scmp.ne.s32.totalorder %s32, %s34
      %p41 = scmp.eq.s32.totalorder %s17, 1
      %p42 = por %p40, %p41
      %p43 = scmp.ne.s32.totalorder %s34, %s35
      %p44 = scmp.eq.s32.totalorder %s17, 0
      %p45 = por %p43, %p44
      %p46 = scmp.ne.s32.totalorder %s34, %s35
      %p47 = scmp.eq.s32.totalorder %s18, 1
      %p48 = por %p46, %p47
      %p50 = scmp.ne.s32.totalorder %s35, %s49
      %p51 = scmp.eq.s32.totalorder %s18, 0
      %p52 = por %p50, %p51
      %s54 = sadd.s32 %s53, 1
      %p57 = scmp.eq.s32.totalorder %s12, 1
      %p58 = scmp.ne.s32.totalorder %s53, %s55
      %p59 = scmp.eq.s32.totalorder %s12, 0
      %p60 = por %p58, %p59
      %p61 = scmp.ne.s32.totalorder %s53, %s55
      %p62 = scmp.eq.s32.totalorder %s17, 1
      %p63 = por %p61, %p62
      %p64 = scmp.ne.s32.totalorder %s55, %s56
      %p65 = scmp.eq.s32.totalorder %s17, 0
      %p66 = por %p64, %p65
      %p67 = scmp.ne.s32.totalorder %s55, %s56
      %p68 = scmp.eq.s32.totalorder %s18, 1
      %p69 = por %p67, %p68
      %p71 = scmp.ne.s32.totalorder %s56, %s70
      %p72 = scmp.eq.s32.totalorder %s18, 0
      %p73 = por %p71, %p72
      %s74 = ssub.s32 %s19, %s31
      %s75 = ssub.s32 %s20, %s27
      %s76 = sor.u32 %s74, %s75
      %p77 = scmp.eq.s32.totalorder %s76, 0
      %s79 = sadd.s32 %s78, 1
      %s80 = scalar_select %p77, %s78, %s79
      %p83 = pneg %p77
      %p84 = scmp.eq.s32.totalorder %s12, 1
      %p85 = por %p83, %p84
      %p86 = scmp.ne.s32.totalorder %s78, %s81
      %p87 = scmp.eq.s32.totalorder %s12, 0
      %p88 = por %p86, %p87
      %p89 = scmp.ne.s32.totalorder %s78, %s81
      %p90 = scmp.eq.s32.totalorder %s17, 1
      %p91 = por %p89, %p90
      %p92 = scmp.ne.s32.totalorder %s81, %s82
      %p93 = scmp.eq.s32.totalorder %s17, 0
      %p94 = por %p92, %p93
      %p95 = scmp.ne.s32.totalorder %s81, %s82
      %p96 = scmp.eq.s32.totalorder %s18, 1
      %p97 = por %p95, %p96
      %p99 = scmp.ne.s32.totalorder %s82, %s98
      %p100 = scmp.eq.s32.totalorder %s18, 0
      %p101 = por %p99, %p100
      %s102 = ssub.s32 %s19, %s31
      %s103 = ssub.s32 %s20, %s27
      %s104 = sor.u32 %s102, %s103
      %p105 = scmp.eq.s32.totalorder %s104, 0
      %s107 = sadd.s32 %s106, 1
      %s108 = scalar_select %p105, %s106, %s107
      %p111 = pneg %p105
      %p112 = scmp.eq.s32.totalorder %s12, 1
      %p113 = por %p111, %p112
      %p114 = scmp.ne.s32.totalorder %s106, %s109
      %p115 = scmp.eq.s32.totalorder %s12, 0
      %p116 = por %p114, %p115
      %p117 = scmp.ne.s32.totalorder %s106, %s109
      %p118 = scmp.eq.s32.totalorder %s17, 1
      %p119 = por %p117, %p118
      %p120 = scmp.ne.s32.totalorder %s109, %s110
      %p121 = scmp.eq.s32.totalorder %s17, 0
      %p122 = por %p120, %p121
      %p123 = scmp.ne.s32.totalorder %s109, %s110
      %p124 = scmp.eq.s32.totalorder %s18, 1
      %p125 = por %p123, %p124
      %p127 = scmp.ne.s32.totalorder %s110, %s126
      %p128 = scmp.eq.s32.totalorder %s18, 0
      %p129 = por %p127, %p128
      %s130 = ssub.s32 %s19, %s31
      %s131 = ssub.s32 %s20, %s27
      %s132 = sor.u32 %s130, %s131
      %p133 = scmp.eq.s32.totalorder %s132, 0
      %s135 = sadd.s32 %s134, 1
      %s136 = scalar_select %p133, %s134, %s135
      %p139 = pneg %p133
      %p140 = scmp.eq.s32.totalorder %s12, 1
      %p141 = por %p139, %p140
      %p142 = scmp.ne.s32.totalorder %s134, %s137
      %p143 = scmp.eq.s32.totalorder %s12, 0
      %p144 = por %p142, %p143
      %p145 = scmp.ne.s32.totalorder %s134, %s137
      %p146 = scmp.eq.s32.totalorder %s17, 1
      %p147 = por %p145, %p146
      %p148 = scmp.ne.s32.totalorder %s137, %s138
      %p149 = scmp.eq.s32.totalorder %s17, 0
      %p150 = por %p148, %p149
      %p151 = scmp.ne.s32.totalorder %s137, %s138
      %p152 = scmp.eq.s32.totalorder %s18, 1
      %p153 = por %p151, %p152
      %p155 = scmp.ne.s32.totalorder %s138, %s154
      %p156 = scmp.eq.s32.totalorder %s18, 0
      %p157 = por %p155, %p156
      %p158 = scmp.le.s32.totalorder 1, %s12
      %p159 = scmp.lt.s32.totalorder %s12, 3
      %p160 = pnand %p158, %p159
      %p161 = pneg %p160
      // Predicated region
      $region9: #{cross_attention_transformer.1} parent=5 // pred_check
        _
      $region10: #{cross_attention_transformer.1} parent=5 // pred_check_branch
        %163 = sbr.rel (%p160) target = $region12
      $region11: #{cross_attention_transformer.1} parent=5 // pred_region
        %s164 = ssub.s32 %s12, 1
        // Predicated region
        $region13: #{cross_attention_transformer.1} parent=11 // pred_check
          %p165 = pneg %p45
        $region14: #{cross_attention_transformer.1} parent=11 // pred_check_branch
          %167 = sbr.rel (%p165) target = $region16
        $region15: #{cross_attention_transformer.1} parent=11 // pred_region
          %s169 = ssub.s32 16, 16
          %170 = vsyncadd [#allocation4], %s169
          %s172 = sshll.u32 %s0, 4
          %s173 = int_to_ptr.vmem [resolvable:$true] %s172
          %175 = dma.vmem_to_smem %s173, 16, [#allocation3], [#allocation4]
        $region16: #{cross_attention_transformer.1} parent=11 // pred_fallthru
          _
        // Predicated region
        $region17: #{cross_attention_transformer.1} parent=11 // pred_check
          %p176 = pneg %p66
        $region18: #{cross_attention_transformer.1} parent=11 // pred_check_branch
          %178 = sbr.rel (%p176) target = $region20
        $region19: #{cross_attention_transformer.1} parent=11 // pred_region
          _
        $region20: #{cross_attention_transformer.1} parent=11 // pred_fallthru
          _
      $region12: #{cross_attention_transformer.1} parent=5 // pred_fallthru
        _
      %p179 = scmp.lt.s32.totalorder %s12, 2
      // Predicated region
      $region21: #{cross_attention_transformer.1} parent=5 // pred_check
        %p180 = pneg %p179
      $region22: #{cross_attention_transformer.1} parent=5 // pred_check_branch
        %182 = sbr.rel (%p180) target = $region24
      $region23: #{cross_attention_transformer.1} parent=5 // pred_region
        // Predicated region
        $region25: #{cross_attention_transformer.1} parent=23 // pred_check
          %p183 = pneg %p88
        $region26: #{cross_attention_transformer.1} parent=23 // pred_check_branch
          %185 = sbr.rel (%p183) target = $region28
        $region27: #{cross_attention_transformer.1} parent=23 // pred_region
          %p186 = scmp.lt.s32.totalorder %s19, 1
          %s187 = scalar_select %p186, %s19, 1
          %p188 = scmp.lt.s32.totalorder %s20, 0
          %s189 = scalar_select %p188, %s20, 0
          %s190 = smul.addr %s187, 4
          %s191 = sadd.s32 %s189, %s190
          %s192 = smul.addr %s191, 4
          %s193 = scalar_lea.vmem %s2, %s192
        $region28: #{cross_attention_transformer.1} parent=23 // pred_fallthru
          _
        // Predicated region
        $region29: #{cross_attention_transformer.1} parent=23 // pred_check
          %p194 = pneg %p116
        $region30: #{cross_attention_transformer.1} parent=23 // pred_check_branch
          %196 = sbr.rel (%p194) target = $region32
        $region31: #{cross_attention_transformer.1} parent=23 // pred_region
          %p197 = scmp.lt.s32.totalorder %s19, 1
          %s198 = scalar_select %p197, %s19, 1
          %p199 = scmp.lt.s32.totalorder %s20, 0
          %s200 = scalar_select %p199, %s20, 0
          %s201 = smul.addr %s198, 4
          %s202 = sadd.s32 %s200, %s201
          %s203 = smul.addr %s202, 4
          %s204 = scalar_lea.vmem %s3, %s203
        $region32: #{cross_attention_transformer.1} parent=23 // pred_fallthru
          _
      $region24: #{cross_attention_transformer.1} parent=5 // pred_fallthru
        _
      %p205 = scmp.le.s32.totalorder 1, %s12
      %p206 = scmp.lt.s32.totalorder %s12, 3
      %p207 = pnand %p205, %p206
      %p208 = pneg %p207
      // Predicated region
      $region33: #{cross_attention_transformer.1} parent=5 // pred_check
        _
      $region34: #{cross_attention_transformer.1} parent=5 // pred_check_branch
        %210 = sbr.rel (%p207) target = $region36
      $region35: #{cross_attention_transformer.1} parent=5 // pred_region
        %s211 = ssub.s32 %s12, 1
        // Predicated region
        $region37: #{cross_attention_transformer.1} parent=35 // pred_check
          %p212 = pneg %p45
        $region38: #{cross_attention_transformer.1} parent=35 // pred_check_branch
          %214 = sbr.rel (%p212) target = $region40
        $region39: #{cross_attention_transformer.1} parent=35 // pred_region
          %215 = dma.done [#allocation4], 16
        $region40: #{cross_attention_transformer.1} parent=35 // pred_fallthru
          _
        %216 = sfence
        %p217 = pneg %p45
        %p218 = pneg %p42
        %p219 = pneg %p66
        %p220 = pneg %p63
        %p221 = scmp.lt.s32.totalorder %s21, 1
        %s222 = scalar_select %p221, %s21, 1
        %p223 = scmp.lt.s32.totalorder %s22, 0
        %s224 = scalar_select %p223, %s22, 0
        %s225 = smul.addr %s222, 4
        %s226 = sadd.s32 %s224, %s225
        %s227 = smul.addr %s226, 4
        %s228 = scalar_lea.vmem %s2, %s227
        %p229 = pneg %p94
        %p230 = pneg %p91
        %p231 = scmp.lt.s32.totalorder %s21, 1
        %s232 = scalar_select %p231, %s21, 1
        %p233 = scmp.lt.s32.totalorder %s22, 0
        %s234 = scalar_select %p233, %s22, 0
        %s235 = smul.addr %s232, 4
        %s236 = sadd.s32 %s234, %s235
        %s237 = smul.addr %s236, 4
        %s238 = scalar_lea.vmem %s3, %s237
        %p239 = pneg %p122
        %p240 = pneg %p119
        %p241 = pneg %p150
        %p242 = pneg %p147
        %p243 = scmp.lt.s32.totalorder %s21, 1
        %s244 = scalar_select %p243, %s21, 1
        %p245 = scmp.lt.s32.totalorder %s22, 0
        %s246 = scalar_select %p245, %s22, 0
        %s247 = smul.addr %s244, 4
        %s248 = sadd.s32 %s246, %s247
        %s249 = smul.addr %s248, 4
        %s250 = scalar_lea.vmem %s4, %s249
        %p251 = scmp.lt.s32.totalorder %s21, 1
        %s252 = scalar_select %p251, %s21, 1
        %p253 = scmp.lt.s32.totalorder %s22, 0
        %s254 = scalar_select %p253, %s22, 0
        %s255 = smul.addr %s252, 4
        %s256 = sadd.s32 %s254, %s255
        %s257 = smul.addr %s256, 4
        %s258 = scalar_lea.vmem %s2, %s257
        %p259 = scmp.lt.s32.totalorder %s21, 1
        %s260 = scalar_select %p259, %s21, 1
        %p261 = scmp.lt.s32.totalorder %s22, 0
        %s262 = scalar_select %p261, %s22, 0
        %s263 = smul.addr %s260, 4
        %s264 = sadd.s32 %s262, %s263
        %s265 = smul.addr %s264, 4
        %s266 = scalar_lea.vmem %s3, %s265
        %p267 = scmp.lt.s32.totalorder %s21, 1
        %s268 = scalar_select %p267, %s21, 1
        %p269 = scmp.lt.s32.totalorder %s22, 0
        %s270 = scalar_select %p269, %s22, 0
        %s271 = smul.addr %s268, 4
        %s272 = sadd.s32 %s270, %s271
        %s273 = smul.addr %s272, 4
        %s274 = scalar_lea.vmem %s4, %s273
        %v275 = vld [vmem:[%s266] sm:$0xf]
        %s276 = sld [smem:[#allocation3]]
        %v277 = vstv %s276
        %v278 = vmul.f32 %v275, %v277
        %s279 = scalar_lea.vmem %s266, 4
        %v280 = vld [vmem:[%s279] sm:$0xf]
        %s281 = sld [smem:[#allocation3 + $0x1]]
        %v282 = vstv %s281
        %v283 = vmul.f32 %v280, %v282
        %v284 = vadd.f32 %v278, %v283
        %s285 = scalar_lea.vmem %s266, 8
        %v286 = vld [vmem:[%s285] sm:$0xf]
        %s287 = sld [smem:[#allocation3 + $0x2]]
        %v288 = vstv %s287
        %v289 = vmul.f32 %v286, %v288
        %v290 = vadd.f32 %v284, %v289
        %s291 = scalar_lea.vmem %s266, 12
        %v292 = vld [vmem:[%s291] sm:$0xf]
        %s293 = sld [smem:[#allocation3 + $0x3]]
        %v294 = vstv %s293
        %v295 = vmul.f32 %v292, %v294
        %v296 = vadd.f32 %v290, %v295
        %s297 = sld [smem:[#allocation2]]
        %v298 = vstv %s297
        %v299 = vadd.f32 %v296, %v298
        %v300 = vxor.u32 %v299, 2147483648
        %v301 = vmul.f32 %v300, 1.442695
        %v302 = vpow.pop %v301
        %v303 = vadd.f32 %v302, 1.0
        %v304 = vrcp.pop %v303
        %v305 = vmul.f32 1.0, %v304
        %v306 = vld [vmem:[%s258] sm:$0xf]
        %v307 = vmul.f32 %v306, %v305
        %308 = vst [vmem:[%s274] sm:$0xf] %v307
        %s309 = scalar_lea.vmem %s258, 4
        %v310 = vld [vmem:[%s309] sm:$0xf]
        %v311 = vmul.f32 %v310, %v305
        %s312 = scalar_lea.vmem %s274, 4
        %313 = vst [vmem:[%s312] sm:$0xf] %v311
        %s314 = scalar_lea.vmem %s258, 8
        %v315 = vld [vmem:[%s314] sm:$0xf]
        %v316 = vmul.f32 %v315, %v305
        %s317 = scalar_lea.vmem %s274, 8
        %318 = vst [vmem:[%s317] sm:$0xf] %v316
        %s319 = scalar_lea.vmem %s258, 12
        %v320 = vld [vmem:[%s319] sm:$0xf]
        %v321 = vmul.f32 %v320, %v305
        %s322 = scalar_lea.vmem %s274, 12
        %323 = vst [vmem:[%s322] sm:$0xf] %v321
        %p324 = scmp.lt.s32.totalorder %s21, 1
        %s325 = scalar_select %p324, %s21, 1
        %p326 = scmp.lt.s32.totalorder %s22, 0
        %s327 = scalar_select %p326, %s22, 0
        %s328 = smul.addr %s325, 4
        %s329 = sadd.s32 %s327, %s328
        %s330 = smul.addr %s329, 4
        %s331 = scalar_lea.vmem %s4, %s330
        // Predicated region
        $region41: #{cross_attention_transformer.1} parent=35 // pred_check
          %p332 = pneg %p147
        $region42: #{cross_attention_transformer.1} parent=35 // pred_check_branch
          %334 = sbr.rel (%p332) target = $region44
        $region43: #{cross_attention_transformer.1} parent=35 // pred_region
          _
        $region44: #{cross_attention_transformer.1} parent=35 // pred_fallthru
          _
      $region36: #{cross_attention_transformer.1} parent=5 // pred_fallthru
        _
      %p335 = scmp.le.s32.totalorder 2, %s12
      // Predicated region
      $region45: #{cross_attention_transformer.1} parent=5 // pred_check
        %p336 = pneg %p335
      $region46: #{cross_attention_transformer.1} parent=5 // pred_check_branch
        %338 = sbr.rel (%p336) target = $region48
      $region47: #{cross_attention_transformer.1} parent=5 // pred_region
        %s339 = ssub.s32 %s12, 2
        // Predicated region
        $region49: #{cross_attention_transformer.1} parent=47 // pred_check
          %p340 = pneg %p153
        $region50: #{cross_attention_transformer.1} parent=47 // pred_check_branch
          %342 = sbr.rel (%p340) target = $region52
        $region51: #{cross_attention_transformer.1} parent=47 // pred_region
          %p343 = scmp.lt.s32.totalorder %s23, 1
          %s344 = scalar_select %p343, %s23, 1
          %p345 = scmp.lt.s32.totalorder %s24, 0
          %s346 = scalar_select %p345, %s24, 0
          %s347 = smul.addr %s344, 4
          %s348 = sadd.s32 %s346, %s347
          %s349 = smul.addr %s348, 4
          %s350 = scalar_lea.vmem %s4, %s349
        $region52: #{cross_attention_transformer.1} parent=47 // pred_fallthru
          _
      $region48: #{cross_attention_transformer.1} parent=5 // pred_fallthru
        _
    $region6: #{cross_attention_transformer.1} parent=1 // loop_footer
      %s16 = sadd.s32 1, %s12
    $region7: #{cross_attention_transformer.1} parent=1 // loop_footer_branch
      %11 = sbr.rel target = $region3
    $region8: #{cross_attention_transformer.1} parent=1 // loop_exit
      _
    %351 = vsyncpa [#allocation4], 1
    %s352 = scalar_lea.sflag [#allocation4], 1
    %353 = vsyncpa %s352, 1

</llo_original>
